<compile_context>
chip_gen: v6e
topology: v6e:2x2x1
jax: 0.10.0
libtpu: 0.0.40
codegen_flags: <defaults>
</compile_context>

<pallas_src>
import functools

import jax
import jax.numpy as jnp
from jax import lax
from jax.experimental import pallas as pl
from jax.experimental.pallas import tpu as pltpu


def _tpu_vmem_capacity_bytes() -> int:
    try:
        return int(pltpu.get_tpu_info().vmem_capacity_bytes)
    except Exception:
        return 64 << 20  # conservative (v7x per-TC physical VMEM)


def _num_tensorcores() -> int:
    """2 for megacore chips (v7x / v4 / v5p as one device), else 1."""
    try:
        kind = jax.devices()[0].device_kind.lower()
    except Exception:
        return 1
    return 2 if any(t in kind for t in ("v7", "v4", "v5p")) else 1


def _scale_aware_attention_kernel(
    x_ref,      # (BB, C, hw_tile)  x.dtype  streamed over grid axis 1
    w1_ref,     # (C, hidden)       f32      fc1.weight^T
    w2_ref,     # (hidden, K)       f32      fc2.weight[:, :hidden]^T / T
    b2_ref,     # (1, K)            f32      (fc2.bias + scale*sum(w2_scale)) / T
    out_ref,    # (1, BB, K)        f32
    acc_ref,    # (BB, C)           f32 scratch: running spatial sum
    *,
    inv_hw: float,
    hw: int,
    hw_tile: int,
    mask_last: bool,
):
    k = pl.program_id(1)

    @pl.when(k == 0)
    def _init():
        acc_ref[...] = jnp.zeros_like(acc_ref)

    # Streaming part of AdaptiveAvgPool2d(1): partial sum over this tile.
    x = x_ref[...].astype(jnp.float32)                       # (BB, C, hw_tile)
    if mask_last:
        # HW not a multiple of hw_tile: zero the out-of-bounds lanes of the
        # partial last tile instead of padding x in HBM.
        lane = lax.broadcasted_iota(jnp.int32, x.shape, dimension=2)
        x = jnp.where(k * hw_tile + lane < hw, x, 0.0)
    acc_ref[...] += jnp.sum(x, axis=-1)                      # (BB, C)

    @pl.when(k == pl.num_programs(1) - 1)
    def _finalize():
        pooled = acc_ref[...] * inv_hw                       # (BB, C)
        # fc1 (1x1 conv, no bias) + ReLU.
        h = jnp.dot(pooled, w1_ref[...], preferred_element_type=jnp.float32)
        h = jnp.maximum(h, 0.0)                              # (BB, hidden)
        # fc2: scale branch, bias and 1/temperature pre-folded into w2/b2.
        logits = jnp.dot(h, w2_ref[...],
                         preferred_element_type=jnp.float32) + b2_ref[...]
        z = logits - jnp.max(logits, axis=-1, keepdims=True)
        e = jnp.exp(z)
        # Exact divide: runs once per batch block, hidden behind the DMA.
        out_ref[0] = (e / jnp.sum(e, axis=-1, keepdims=True)).astype(out_ref.dtype)


def scale_aware_attention2d(x, fc1_weight, fc2_weight, fc2_bias, scale,
                            temperature, training=True, max_hw_tile=None):
    """JAX/Pallas equivalent of ScaleAwareAttention2d.forward.

    x:           (B, C, H, W) NCHW (f32 or bf16; accumulation is f32)
    fc1_weight:  (hidden, C, 1, 1)     Conv2d(C, hidden, 1, bias=False)
    fc2_weight:  (K, hidden + 2, 1, 1) Conv2d(hidden + 2, K, 1, bias=True)
    fc2_bias:    (K,)
    scale:       scalar (python or traced)
    temperature: module hyperparameter (python or traced scalar)
    """
    B, C, H, W = x.shape
    hidden = fc1_weight.shape[0]
    K = fc2_weight.shape[0]
    HW = H * W
    itemsize = jnp.dtype(x.dtype).itemsize

    # Eval mode forces temperature = 1 (as in the PyTorch forward).
    temp = jnp.asarray(temperature, jnp.float32) if training else jnp.float32(1.0)

    # ---- parameter folding (wrapper-side algebra, free) ---------------------
    w1_t = fc1_weight.reshape(hidden, C).astype(jnp.float32).T          # (C, hidden)
    w2 = fc2_weight.reshape(K, hidden + 2).astype(jnp.float32)
    w2h_eff = (w2[:, :hidden] / temp).T                                 # (hidden, K)
    b2_eff = ((fc2_bias.astype(jnp.float32)
               + jnp.asarray(scale, jnp.float32) * jnp.sum(w2[:, hidden:], axis=1))
              / temp).reshape(1, K)                                     # (1, K)

    # ---- generation-aware budgets -------------------------------------------
    vmem_cap = _tpu_vmem_capacity_bytes()
    vmem_limit = int(vmem_cap * 3 // 4)          # never claim >75% of physical
    tile_budget = max(vmem_cap // 16, 1 << 20)   # ~4 MiB v7x, ~8 MiB v5e/v6e

    # ---- batch blocking ------------------------------------------------------
    # Split across both TensorCores only on 2-TC chips; also split further if
    # even a minimal (BB, C, 128) tile would not fit the per-buffer budget.
    num_tc = _num_tensorcores()
    num_b_blocks = num_tc if (num_tc > 1 and B % num_tc == 0) else 1

    def _min_tile_bytes(nb):
        return (B // nb) * C * 128 * itemsize

    if _min_tile_bytes(num_b_blocks) > tile_budget:
        for nb in range(num_b_blocks + 1, B + 1):
            if B % nb == 0 and _min_tile_bytes(nb) <= tile_budget:
                num_b_blocks = nb
                break
        else:
            num_b_blocks = B
    BB = B // num_b_blocks

    # ---- spatial tiling ------------------------------------------------------
    hw_tile_cap = max(128, (tile_budget // max(BB * C * itemsize, 1)) // 128 * 128)
    if max_hw_tile is not None:
        hw_tile_cap = min(hw_tile_cap, max(128, (int(max_hw_tile) // 128) * 128))

    if HW <= hw_tile_cap:
        hw_tile = HW                       # single full-extent tile, no mask
    else:
        # Prefer a 128-multiple divisor of HW (avoids the ragged-tile mask),
        # but only if it is not much smaller than the cap.
        best_div, t = None, hw_tile_cap
        while t >= 128:
            if HW % t == 0:
                best_div = t
                break
            t -= 128
        hw_tile = best_div if (best_div is not None and
                               best_div * 2 >= hw_tile_cap) else hw_tile_cap
    num_hw_tiles = pl.cdiv(HW, hw_tile)
    mask_last = (HW % hw_tile) != 0

    # Free metadata reshape: no pad, no extra HBM copy of x.
    x3 = x.reshape(B, C, HW)

    kernel = functools.partial(
        _scale_aware_attention_kernel,
        inv_hw=1.0 / HW, hw=HW, hw_tile=hw_tile, mask_last=mask_last)

    cost = pl.CostEstimate(
        flops=2 * B * C * HW + 2 * B * C * hidden + 2 * B * hidden * K,
        transcendentals=B * K,
        bytes_accessed=int(x3.size * itemsize
                           + (w1_t.size + w2h_eff.size + b2_eff.size + B * K) * 4))

    # Small tiles and many reduction steps -> deepen x's pipeline.
    deep_pipeline = (hw_tile <= 512) and (num_hw_tiles >= 4)

    def _spec(shape, index_map, mode):
        if mode is None:
            return pl.BlockSpec(shape, index_map)
        return pl.BlockSpec(shape, index_map, pipeline_mode=mode)

    def build(use_pipeline_modes):
        x_mode = pl.Buffered(3) if (use_pipeline_modes and deep_pipeline) else None
        c_mode = pl.Buffered(1) if use_pipeline_modes else None
        const = lambda i, k: (0, 0)
        grid_spec = pltpu.PrefetchScalarGridSpec(
            num_scalar_prefetch=0,
            grid=(num_b_blocks, num_hw_tiles),
            in_specs=[
                _spec((BB, C, hw_tile), lambda i, k: (i, 0, k), x_mode),  # x
                _spec((C, hidden), const, c_mode),                        # w1^T
                _spec((hidden, K), const, c_mode),                        # w2_eff
                _spec((1, K), const, c_mode),                             # b2_eff
            ],
            out_specs=pl.BlockSpec((1, BB, K), lambda i, k: (i, 0, 0)),
            scratch_shapes=[pltpu.VMEM((BB, C), jnp.float32)],
        )
        return pl.pallas_call(
            kernel,
            out_shape=jax.ShapeDtypeStruct((num_b_blocks, BB, K), jnp.float32),
            grid_spec=grid_spec,
            compiler_params=pltpu.CompilerParams(
                dimension_semantics=("parallel", "arbitrary"),
                vmem_limit_bytes=vmem_limit),
            cost_estimate=cost)

    args = (x3, w1_t, w2h_eff, b2_eff)
    try:
        out3 = build(True)(*args)
    except Exception:
        # pipeline_mode (pl.Buffered) rejected by this jax/libtpu build:
        # fall back to default double-buffering (identical math).
        out3 = build(False)(*args)
    return out3.reshape(B, K)


def _reference(x, fc1_weight, fc2_weight, fc2_bias, scale, temperature,
               training=True):
    """Pure-jnp reference mirroring the PyTorch forward, for verification."""
    B, C, H, W = x.shape
    hidden = fc1_weight.shape[0]
    K = fc2_weight.shape[0]
    temp = float(temperature) if training else 1.0
    pooled = jnp.mean(x.astype(jnp.float32), axis=(2, 3))                   # (B, C)
    h = jnp.maximum(
        pooled @ fc1_weight.reshape(hidden, C).astype(jnp.float32).T, 0.0)  # (B, hidden)
    cat = jnp.concatenate([h, jnp.full((B, 2), scale, jnp.float32)], axis=1)
    logits = cat @ fc2_weight.reshape(K, hidden + 2).astype(jnp.float32).T \
        + fc2_bias.astype(jnp.float32)                                      # (B, K)
    return jax.nn.softmax(logits / temp, axis=1)


if __name__ == "__main__":
    # Module hyperparameters (temperature % 3 == 1 as the module asserts).
    in_channels = 4
    ratios = 1.0
    K = 4
    temperature = 4
    hidden = int(in_channels * ratios) + 1   # in_channels != 3 branch -> 5

    key = jax.random.PRNGKey(0)
    kx, k1, k2, kx2, kx3 = jax.random.split(key, 5)

    # Deterministic parameters (kaiming_normal_ fan_out, relu; bias = 0).
    fc1_weight = jax.random.normal(
        k1, (hidden, in_channels, 1, 1), dtype=jnp.float32) * jnp.sqrt(2.0 / hidden)
    fc2_weight = jax.random.normal(
        k2, (K, hidden + 2, 1, 1), dtype=jnp.float32) * jnp.sqrt(2.0 / K)
    fc2_bias = jnp.zeros((K,), dtype=jnp.float32)
    scale = 0.5

    def check(xx, max_hw_tile=None, tol=1e-4):
        out = scale_aware_attention2d(
            xx, fc1_weight, fc2_weight, fc2_bias, scale, temperature,
            training=True, max_hw_tile=max_hw_tile)
        out = jax.block_until_ready(out)
        ref = _reference(xx, fc1_weight, fc2_weight, fc2_bias, scale,
                         temperature, training=True)
        assert out.shape == ref.shape
        assert jnp.allclose(out, ref, atol=tol, rtol=tol)
        assert jnp.allclose(jnp.sum(out, axis=1), 1.0, atol=tol)

    # 1) small shape, single full-HW tile (no masking, single reduction step)
    x = jax.random.normal(kx, (2, in_channels, 16, 16), dtype=jnp.float32)
    check(x)
    # 2) forced multi-step spatial reduction with aligned tiles
    check(x, max_hw_tile=128)
    # 3) ragged spatial extent -> in-kernel lane masking of the last tile
    #    (the no-HBM-pad path)
    x_r = jax.random.normal(kx3, (2, in_channels, 16, 10), dtype=jnp.float32)
    check(x_r, max_hw_tile=128)
    # 4) larger batch + many small tiles: exercises the megacore batch split
    #    (on 2-TC chips) and the deeper (Buffered(3)) x pipeline request
    x_big = jax.random.normal(kx2, (16, in_channels, 32, 32), dtype=jnp.float32)
    check(x_big, max_hw_tile=128)

    print("KERNEL_OK")
</pallas_src>

<mosaic_0001>
module attributes {stable_mosaic.version = 11 : i64} {
  func.func @_scale_aware_attention_kernel(%arg0: i32, %arg1: i32, %arg2: memref<2x4x256xf32, #tpu.memory_space<vmem>>, %arg3: memref<4x5xf32, #tpu.memory_space<vmem>>, %arg4: memref<5x4xf32, #tpu.memory_space<vmem>>, %arg5: memref<1x4xf32, #tpu.memory_space<vmem>>, %arg6: memref<1x2x4xf32, #tpu.memory_space<vmem>>, %arg7: memref<2x4xf32, #tpu.memory_space<vmem>>) attributes {dimension_semantics = [#tpu.dimension_semantics<parallel>, #tpu.dimension_semantics<arbitrary>], iteration_bounds = array<i64: 1, 1>, scalar_prefetch = 0 : i64, scratch_operands = 1 : i64, tpu.core_type = #tpu.core_type<tc>, window_params = [{transform_indices = @transform_0, window_bounds = array<i64: 2, 4, 256>}, {pipeline_mode = #tpu.pipeline_mode<synchronous>, transform_indices = @transform_1, window_bounds = array<i64: 4, 5>}, {pipeline_mode = #tpu.pipeline_mode<synchronous>, transform_indices = @transform_2, window_bounds = array<i64: 5, 4>}, {pipeline_mode = #tpu.pipeline_mode<synchronous>, transform_indices = @transform_3, window_bounds = array<i64: 1, 4>}, {transform_indices = @transform_4, window_bounds = array<i64: 1, 2, 4>}]} {
    %c0_i32 = arith.constant 0 : i32
    %0 = arith.cmpi eq, %arg1, %c0_i32 : i32
    %1 = arith.extui %0 : i1 to i32
    %c0_i32_0 = arith.constant 0 : i32
    %2 = arith.cmpi ne, %1, %c0_i32_0 : i32
    scf.if %2 {
      %cst_9 = arith.constant 0.000000e+00 : f32
      %11 = vector.broadcast %cst_9 : f32 to vector<2x4xf32>
      %c0_10 = arith.constant 0 : index
      %c0_11 = arith.constant 0 : index
      %12 = vector.load %arg7[%c0_10, %c0_11] : memref<2x4xf32, #tpu.memory_space<vmem>>, vector<2x4xf32>
      tpu.vector_store %arg7[%c0_10, %c0_11], %11 {strides = array<i32>} : memref<2x4xf32, #tpu.memory_space<vmem>>, vector<2x4xf32>,
    } else {
    }
    %c0 = arith.constant 0 : index
    %c0_1 = arith.constant 0 : index
    %c0_2 = arith.constant 0 : index
    %3 = vector.load %arg2[%c0, %c0_1, %c0_2] : memref<2x4x256xf32, #tpu.memory_space<vmem>>, vector<2x4x256xf32>
    %c0_3 = arith.constant 0 : index
    %c0_4 = arith.constant 0 : index
    %4 = vector.load %arg7[%c0_3, %c0_4] : memref<2x4xf32, #tpu.memory_space<vmem>>, vector<2x4xf32>
    %cst = arith.constant dense<0.000000e+00> : vector<2x4xf32>
    %5 = vector.multi_reduction <add>, %3, %cst [2] : vector<2x4x256xf32> to vector<2x4xf32>
    %6 = arith.addf %4, %5 : vector<2x4xf32>
    %c0_5 = arith.constant 0 : index
    %c0_6 = arith.constant 0 : index
    %7 = vector.load %arg7[%c0_5, %c0_6] : memref<2x4xf32, #tpu.memory_space<vmem>>, vector<2x4xf32>
    tpu.vector_store %arg7[%c0_5, %c0_6], %6 {strides = array<i32>} : memref<2x4xf32, #tpu.memory_space<vmem>>, vector<2x4xf32>,
    %c0_i32_7 = arith.constant 0 : i32
    %8 = arith.cmpi eq, %arg1, %c0_i32_7 : i32
    %9 = arith.extui %8 : i1 to i32
    %c0_i32_8 = arith.constant 0 : i32
    %10 = arith.cmpi ne, %9, %c0_i32_8 : i32
    scf.if %10 {
      %c0_9 = arith.constant 0 : index
      %c0_10 = arith.constant 0 : index
      %11 = vector.load %arg7[%c0_9, %c0_10] : memref<2x4xf32, #tpu.memory_space<vmem>>, vector<2x4xf32>
      %cst_11 = arith.constant 3.906250e-03 : f32
      %12 = vector.broadcast %cst_11 : f32 to vector<2x4xf32>
      %13 = arith.mulf %11, %12 : vector<2x4xf32>
      %c0_12 = arith.constant 0 : index
      %c0_13 = arith.constant 0 : index
      %14 = vector.load %arg3[%c0_12, %c0_13] : memref<4x5xf32, #tpu.memory_space<vmem>>, vector<4x5xf32>
      %cst_14 = arith.constant dense<0.000000e+00> : vector<2x5xf32>
      %15 = tpu.matmul %13, %14, %cst_14 {dimension_numbers = #tpu.dot_dimension_numbers<[1], [0], [0], [1], [0, 0, 1, 1], [], []>} : vector<2x4xf32>, vector<4x5xf32>, vector<2x5xf32> -> vector<2x5xf32>
      %cst_15 = arith.constant 0.000000e+00 : f32
      %16 = vector.broadcast %cst_15 : f32 to vector<2x5xf32>
      %17 = arith.maximumf %15, %16 : vector<2x5xf32>
      %c0_16 = arith.constant 0 : index
      %c0_17 = arith.constant 0 : index
      %18 = vector.load %arg4[%c0_16, %c0_17] : memref<5x4xf32, #tpu.memory_space<vmem>>, vector<5x4xf32>
      %cst_18 = arith.constant dense<0.000000e+00> : vector<2x4xf32>
      %19 = tpu.matmul %17, %18, %cst_18 {dimension_numbers = #tpu.dot_dimension_numbers<[1], [0], [0], [1], [0, 0, 1, 1], [], []>} : vector<2x5xf32>, vector<5x4xf32>, vector<2x4xf32> -> vector<2x4xf32>
      %c0_19 = arith.constant 0 : index
      %c0_20 = arith.constant 0 : index
      %20 = vector.load %arg5[%c0_19, %c0_20] : memref<1x4xf32, #tpu.memory_space<vmem>>, vector<1x4xf32>
      %21 = vector.broadcast %20 : vector<1x4xf32> to vector<2x4xf32>
      %22 = arith.addf %19, %21 : vector<2x4xf32>
      %cst_21 = arith.constant dense<0xFF800000> : vector<2xf32>
      %23 = vector.multi_reduction <maximumf>, %22, %cst_21 [1] : vector<2x4xf32> to vector<2xf32>
      %24 = vector.shape_cast %23 : vector<2xf32> to vector<2x1xf32>
      %25 = vector.broadcast %24 : vector<2x1xf32> to vector<2x4xf32>
      %26 = arith.subf %22, %25 : vector<2x4xf32>
      %27 = math.exp %26 : vector<2x4xf32>
      %cst_22 = arith.constant dense<0.000000e+00> : vector<2xf32>
      %28 = vector.multi_reduction <add>, %27, %cst_22 [1] : vector<2x4xf32> to vector<2xf32>
      %29 = vector.shape_cast %28 : vector<2xf32> to vector<2x1xf32>
      %30 = vector.broadcast %29 : vector<2x1xf32> to vector<2x4xf32>
      %31 = arith.divf %27, %30 : vector<2x4xf32>
      %c0_23 = arith.constant 0 : index
      %c0_24 = arith.constant 0 : index
      %c0_25 = arith.constant 0 : index
      %32 = vector.load %arg6[%c0_23, %c0_24, %c0_25] : memref<1x2x4xf32, #tpu.memory_space<vmem>>, vector<1x2x4xf32>
      %33 = vector.shape_cast %32 : vector<1x2x4xf32> to vector<2x4xf32>
      %34 = vector.shape_cast %31 : vector<2x4xf32> to vector<1x2x4xf32>
      tpu.vector_store %arg6[%c0_23, %c0_24, %c0_25], %34 {strides = array<i32>} : memref<1x2x4xf32, #tpu.memory_space<vmem>>, vector<1x2x4xf32>,
    } else {
    }
    return
  }
  func.func @transform_0(%arg0: i32, %arg1: i32) -> (i32, i32, i32) {
    %c0_i32 = arith.constant 0 : i32
    %c0_i32_0 = arith.constant 0 : i32
    return %arg0, %c0_i32, %arg1 : i32, i32, i32
  }
  func.func @transform_1(%arg0: i32, %arg1: i32) -> (i32, i32) {
    %c0_i32 = arith.constant 0 : i32
    %c0_i32_0 = arith.constant 0 : i32
    %c0_i32_1 = arith.constant 0 : i32
    return %c0_i32, %c0_i32_0 : i32, i32
  }
  func.func @transform_2(%arg0: i32, %arg1: i32) -> (i32, i32) {
    %c0_i32 = arith.constant 0 : i32
    %c0_i32_0 = arith.constant 0 : i32
    %c0_i32_1 = arith.constant 0 : i32
    return %c0_i32, %c0_i32_0 : i32, i32
  }
  func.func @transform_3(%arg0: i32, %arg1: i32) -> (i32, i32) {
    %c0_i32 = arith.constant 0 : i32
    %c0_i32_0 = arith.constant 0 : i32
    %c0_i32_1 = arith.constant 0 : i32
    return %c0_i32, %c0_i32_0 : i32, i32
  }
  func.func @transform_4(%arg0: i32, %arg1: i32) -> (i32, i32, i32) {
    %c0_i32 = arith.constant 0 : i32
    %c0_i32_0 = arith.constant 0 : i32
    %c0_i32_1 = arith.constant 0 : i32
    return %arg0, %c0_i32, %c0_i32_0 : i32, i32, i32
  }
}

module attributes {stable_mosaic.version = 11 : i64} {
  func.func @_scale_aware_attention_kernel(%arg0: i32, %arg1: i32, %arg2: memref<2x4x256xf32, #tpu.memory_space<vmem>>, %arg3: memref<4x5xf32, #tpu.memory_space<vmem>>, %arg4: memref<5x4xf32, #tpu.memory_space<vmem>>, %arg5: memref<1x4xf32, #tpu.memory_space<vmem>>, %arg6: memref<1x2x4xf32, #tpu.memory_space<vmem>>, %arg7: memref<2x4xf32, #tpu.memory_space<vmem>>) attributes {dimension_semantics = [#tpu.dimension_semantics<parallel>, #tpu.dimension_semantics<arbitrary>], iteration_bounds = array<i64: 1, 1>, scalar_prefetch = 0 : i64, scratch_operands = 1 : i64, tpu.core_type = #tpu.core_type<tc>, window_params = [{transform_indices = @transform_0, window_bounds = array<i64: 2, 4, 256>}, {pipeline_mode = #tpu.pipeline_mode<synchronous>, transform_indices = @transform_1, window_bounds = array<i64: 4, 5>}, {pipeline_mode = #tpu.pipeline_mode<synchronous>, transform_indices = @transform_2, window_bounds = array<i64: 5, 4>}, {pipeline_mode = #tpu.pipeline_mode<synchronous>, transform_indices = @transform_3, window_bounds = array<i64: 1, 4>}, {transform_indices = @transform_4, window_bounds = array<i64: 1, 2, 4>}]} {
    %c0_i32 = arith.constant 0 : i32
    %0 = arith.cmpi eq, %arg1, %c0_i32 : i32
    %1 = arith.extui %0 : i1 to i32
    %c0_i32_0 = arith.constant 0 : i32
    %2 = arith.cmpi ne, %1, %c0_i32_0 : i32
    scf.if %2 {
      %cst_9 = arith.constant 0.000000e+00 : f32
      %11 = vector.broadcast %cst_9 : f32 to vector<2x4xf32>
      %c0_10 = arith.constant 0 : index
      %c0_11 = arith.constant 0 : index
      %12 = vector.load %arg7[%c0_10, %c0_11] : memref<2x4xf32, #tpu.memory_space<vmem>>, vector<2x4xf32>
      tpu.vector_store %arg7[%c0_10, %c0_11], %11 {strides = array<i32>} : memref<2x4xf32, #tpu.memory_space<vmem>>, vector<2x4xf32>,
    } else {
    }
    %c0 = arith.constant 0 : index
    %c0_1 = arith.constant 0 : index
    %c0_2 = arith.constant 0 : index
    %3 = vector.load %arg2[%c0, %c0_1, %c0_2] : memref<2x4x256xf32, #tpu.memory_space<vmem>>, vector<2x4x256xf32>
    %c0_3 = arith.constant 0 : index
    %c0_4 = arith.constant 0 : index
    %4 = vector.load %arg7[%c0_3, %c0_4] : memref<2x4xf32, #tpu.memory_space<vmem>>, vector<2x4xf32>
    %cst = arith.constant dense<0.000000e+00> : vector<2x4xf32>
    %5 = vector.multi_reduction <add>, %3, %cst [2] : vector<2x4x256xf32> to vector<2x4xf32>
    %6 = arith.addf %4, %5 : vector<2x4xf32>
    %c0_5 = arith.constant 0 : index
    %c0_6 = arith.constant 0 : index
    %7 = vector.load %arg7[%c0_5, %c0_6] : memref<2x4xf32, #tpu.memory_space<vmem>>, vector<2x4xf32>
    tpu.vector_store %arg7[%c0_5, %c0_6], %6 {strides = array<i32>} : memref<2x4xf32, #tpu.memory_space<vmem>>, vector<2x4xf32>,
    %c0_i32_7 = arith.constant 0 : i32
    %8 = arith.cmpi eq, %arg1, %c0_i32_7 : i32
    %9 = arith.extui %8 : i1 to i32
    %c0_i32_8 = arith.constant 0 : i32
    %10 = arith.cmpi ne, %9, %c0_i32_8 : i32
    scf.if %10 {
      %c0_9 = arith.constant 0 : index
      %c0_10 = arith.constant 0 : index
      %11 = vector.load %arg7[%c0_9, %c0_10] : memref<2x4xf32, #tpu.memory_space<vmem>>, vector<2x4xf32>
      %cst_11 = arith.constant 3.906250e-03 : f32
      %12 = vector.broadcast %cst_11 : f32 to vector<2x4xf32>
      %13 = arith.mulf %11, %12 : vector<2x4xf32>
      %c0_12 = arith.constant 0 : index
      %c0_13 = arith.constant 0 : index
      %14 = vector.load %arg3[%c0_12, %c0_13] : memref<4x5xf32, #tpu.memory_space<vmem>>, vector<4x5xf32>
      %cst_14 = arith.constant dense<0.000000e+00> : vector<2x5xf32>
      %15 = tpu.matmul %13, %14, %cst_14 {dimension_numbers = #tpu.dot_dimension_numbers<[1], [0], [0], [1], [0, 0, 1, 1], [], []>} : vector<2x4xf32>, vector<4x5xf32>, vector<2x5xf32> -> vector<2x5xf32>
      %cst_15 = arith.constant 0.000000e+00 : f32
      %16 = vector.broadcast %cst_15 : f32 to vector<2x5xf32>
      %17 = arith.maximumf %15, %16 : vector<2x5xf32>
      %c0_16 = arith.constant 0 : index
      %c0_17 = arith.constant 0 : index
      %18 = vector.load %arg4[%c0_16, %c0_17] : memref<5x4xf32, #tpu.memory_space<vmem>>, vector<5x4xf32>
      %cst_18 = arith.constant dense<0.000000e+00> : vector<2x4xf32>
      %19 = tpu.matmul %17, %18, %cst_18 {dimension_numbers = #tpu.dot_dimension_numbers<[1], [0], [0], [1], [0, 0, 1, 1], [], []>} : vector<2x5xf32>, vector<5x4xf32>, vector<2x4xf32> -> vector<2x4xf32>
      %c0_19 = arith.constant 0 : index
      %c0_20 = arith.constant 0 : index
      %20 = vector.load %arg5[%c0_19, %c0_20] : memref<1x4xf32, #tpu.memory_space<vmem>>, vector<1x4xf32>
      %21 = vector.broadcast %20 : vector<1x4xf32> to vector<2x4xf32>
      %22 = arith.addf %19, %21 : vector<2x4xf32>
      %cst_21 = arith.constant dense<0xFF800000> : vector<2xf32>
      %23 = vector.multi_reduction <maximumf>, %22, %cst_21 [1] : vector<2x4xf32> to vector<2xf32>
      %24 = vector.shape_cast %23 : vector<2xf32> to vector<2x1xf32>
      %25 = vector.broadcast %24 : vector<2x1xf32> to vector<2x4xf32>
      %26 = arith.subf %22, %25 : vector<2x4xf32>
      %27 = math.exp %26 : vector<2x4xf32>
      %cst_22 = arith.constant dense<0.000000e+00> : vector<2xf32>
      %28 = vector.multi_reduction <add>, %27, %cst_22 [1] : vector<2x4xf32> to vector<2xf32>
      %29 = vector.shape_cast %28 : vector<2xf32> to vector<2x1xf32>
      %30 = vector.broadcast %29 : vector<2x1xf32> to vector<2x4xf32>
      %31 = arith.divf %27, %30 : vector<2x4xf32>
      %c0_23 = arith.constant 0 : index
      %c0_24 = arith.constant 0 : index
      %c0_25 = arith.constant 0 : index
      %32 = vector.load %arg6[%c0_23, %c0_24, %c0_25] : memref<1x2x4xf32, #tpu.memory_space<vmem>>, vector<1x2x4xf32>
      %33 = vector.shape_cast %32 : vector<1x2x4xf32> to vector<2x4xf32>
      %34 = vector.shape_cast %31 : vector<2x4xf32> to vector<1x2x4xf32>
      tpu.vector_store %arg6[%c0_23, %c0_24, %c0_25], %34 {strides = array<i32>} : memref<1x2x4xf32, #tpu.memory_space<vmem>>, vector<1x2x4xf32>,
    } else {
    }
    return
  }
  func.func @transform_0(%arg0: i32, %arg1: i32) -> (i32, i32, i32) {
    %c0_i32 = arith.constant 0 : i32
    %c0_i32_0 = arith.constant 0 : i32
    return %arg0, %c0_i32, %arg1 : i32, i32, i32
  }
  func.func @transform_1(%arg0: i32, %arg1: i32) -> (i32, i32) {
    %c0_i32 = arith.constant 0 : i32
    %c0_i32_0 = arith.constant 0 : i32
    %c0_i32_1 = arith.constant 0 : i32
    return %c0_i32, %c0_i32_0 : i32, i32
  }
  func.func @transform_2(%arg0: i32, %arg1: i32) -> (i32, i32) {
    %c0_i32 = arith.constant 0 : i32
    %c0_i32_0 = arith.constant 0 : i32
    %c0_i32_1 = arith.constant 0 : i32
    return %c0_i32, %c0_i32_0 : i32, i32
  }
  func.func @transform_3(%arg0: i32, %arg1: i32) -> (i32, i32) {
    %c0_i32 = arith.constant 0 : i32
    %c0_i32_0 = arith.constant 0 : i32
    %c0_i32_1 = arith.constant 0 : i32
    return %c0_i32, %c0_i32_0 : i32, i32
  }
  func.func @transform_4(%arg0: i32, %arg1: i32) -> (i32, i32, i32) {
    %c0_i32 = arith.constant 0 : i32
    %c0_i32_0 = arith.constant 0 : i32
    %c0_i32_1 = arith.constant 0 : i32
    return %arg0, %c0_i32, %c0_i32_0 : i32, i32, i32
  }
}

</mosaic_0001>

<llo_original>
// kernel: tpu_custom_call.1
$region0: #{tpu_custom_call.1}
  #allocation0 [shape = 'u32[]', space=smem, size = 0x4, offset = 0x4, fixed_abs, tag = 'smem constant byte address 0x4 - core index']
  #allocation1 [shape = 'u32[144,128]{1,0:T(1,128)}', space=vmem, size = 0x12000, scoped, tag = 'internal scratch']
  #allocation2 [shape = 'f32[2,4]{1,0:T(2,128)}', space=vmem, size = 0x400, scoped, tag = 'scratch operand']
  %s0 = inlined_call_operand.hbm [shape: f32[2,4,256], index: 0, kind: input, shape index: {}]
  %s1 = inlined_call_operand.vmem [shape: f32[4,5], index: 1, kind: input, shape index: {}]
  %s2 = inlined_call_operand.vmem [shape: f32[5,4], index: 2, kind: input, shape index: {}]
  %s3 = inlined_call_operand.vmem [shape: f32[1,4], index: 3, kind: input, shape index: {}]
  %s4 = inlined_call_operand.hbm [shape: f32[1,2,4], index: 4, kind: output, shape index: {}]
  %s5 = sld [smem:[#allocation0]]
  $region38: #{tpu_custom_call.1} parent=0
    _
  %s7 = ssub.s32 1, %s5
  %s8 = scalar_select 0, %s7, %s5
  $region1: #{tpu_custom_call.1} parent=0
    #allocation3 [shape = 'u8[8192]{0}', space=vmem, size = 0x2000, scoped, tag = 'input window, operand 0, single buffered']
    #allocation4 [shape = 's32[1]{0}', space=sflag, size = 0x4, scoped, tag = 'scoped memory for tpu_custom_call.1']
    #allocation5 [shape = 's32[1]{0}', space=sflag, size = 0x4, scoped, tag = 'scoped memory for tpu_custom_call.1']
    #allocation6 [shape = 'u8[1024]{0}', space=vmem, size = 0x400, scoped, tag = 'output window, operand 0, single buffered']
    %9 = vsyncpa [#allocation4], 0
    %10 = vsyncpa [#allocation5], 0
    // Predicated region
    $region2: #{tpu_custom_call.1} parent=1 // pred_check
      _
    $region3: #{tpu_custom_call.1} parent=1 // pred_check_branch
      %12 = sbr.rel (0) target = $region5
    $region4: #{tpu_custom_call.1} parent=1 // pred_region
      %s14 = ssub.s32 256, 256
      %15 = vsyncadd [#allocation4], %s14
      %s16 = sshll.u32 [#allocation3], 4
      %s17 = int_to_ptr.vmem [resolvable:$true] %s16
      %22 = dma.hbm_to_vmem [thread:$0]  %s0, 256, %s17, [#allocation4], 128, 128, 8
    $region5: #{tpu_custom_call.1} parent=1 // pred_fallthru
      _
    // Predicated region
    $region6: #{tpu_custom_call.1} parent=1 // pred_check
      _
    $region7: #{tpu_custom_call.1} parent=1 // pred_check_branch
      %24 = sbr.rel (0) target = $region9
    $region8: #{tpu_custom_call.1} parent=1 // pred_region
      _
    $region9: #{tpu_custom_call.1} parent=1 // pred_fallthru
      _
    // Predicated region
    $region10: #{tpu_custom_call.1} parent=1 // pred_check
      _
    $region11: #{tpu_custom_call.1} parent=1 // pred_check_branch
      %26 = sbr.rel (0) target = $region13
    $region12: #{tpu_custom_call.1} parent=1 // pred_region
      _
    $region13: #{tpu_custom_call.1} parent=1 // pred_fallthru
      _
    // Predicated region
    $region14: #{tpu_custom_call.1} parent=1 // pred_check
      _
    $region15: #{tpu_custom_call.1} parent=1 // pred_check_branch
      %28 = sbr.rel (0) target = $region17
    $region16: #{tpu_custom_call.1} parent=1 // pred_region
      _
    $region17: #{tpu_custom_call.1} parent=1 // pred_fallthru
      _
    // Predicated region
    $region18: #{tpu_custom_call.1} parent=1 // pred_check
      _
    $region19: #{tpu_custom_call.1} parent=1 // pred_check_branch
      %30 = sbr.rel (0) target = $region21
    $region20: #{tpu_custom_call.1} parent=1 // pred_region
      %31 = dma.done [#allocation4], 256
    $region21: #{tpu_custom_call.1} parent=1 // pred_fallthru
      _
    %p32 = scmp.eq.s32.totalorder 0, 0
    // Predicated region
    $region22: #{tpu_custom_call.1} parent=1 // pred_check
      %p33 = pneg %p32
    $region23: #{tpu_custom_call.1} parent=1 // pred_check_branch
      %35 = sbr.rel (%p33) target = $region25
    $region24: #{tpu_custom_call.1} parent=1 // pred_region
      %vm36 = vcmask 25600
      %37 = vst.msk [vmem:[#allocation2] sm:$0x3] %vm36, 0.0
    $region25: #{tpu_custom_call.1} parent=1 // pred_fallthru
      _
    %v38 = vld [vmem:[#allocation3] sm:$0xff]
    %v39 = vld [vmem:[#allocation3 + $0x8] sm:$0xff]
    %v40 = vld [vmem:[#allocation2] sm:$0x3]
    %v43 = vcombine.high %v38, %v38
    %v44 = vcombine.high %v39, %v39
    %vm47 = vcmask 1043456
    %v48 = vsel %vm47, %v38, 0.0
    %v49 = vsel %vm47, %v43, 0.0
    %v50 = vadd.f32 %v48, %v49
    %51 = vadd.xlane.f32.xlu0 %v50
    %v52 = vpop.xlane.xlu0 %51
    %v53 = vsel %vm47, %v39, 0.0
    %v54 = vsel %vm47, %v44, 0.0
    %v55 = vadd.f32 %v53, %v54
    %56 = vadd.xlane.f32.xlu0 %v55
    %v57 = vpop.xlane.xlu0 %56
    %v60 = vlaneseq
    %v61 = vand.u32 %v60, 127
    %v62 = vlaneseq
    %v63 = vshrl.u32 %v62, 7
    %v64 = vsub.s32 %v61, %v63
    %v65 = vrot.slane %v52, %v64
    %v66 = vlaneseq
    %v67 = vshrl.u32 %v66, 7
    %v68 = vsub.s32 %v61, %v67
    %v69 = vrot.slane %v57, %v68
    %vm70 = vcmask 1041409
    %v71 = vsel %vm70, %v69, %v65
    %v73 = vadd.f32 %v40, %v71
    %vm74 = vcmask 25600
    %75 = vst.msk [vmem:[#allocation2] sm:$0x3] %vm74, %v73
    // Predicated region
    $region26: #{tpu_custom_call.1} parent=1 // pred_check
      %p76 = pneg %p32
    $region27: #{tpu_custom_call.1} parent=1 // pred_check_branch
      %78 = sbr.rel (%p76) target = $region29
    $region28: #{tpu_custom_call.1} parent=1 // pred_region
      %v79 = vld [vmem:[#allocation2] sm:$0x3]
      %v80 = vmul.f32 %v79, 0.00390625
      %v81 = vld [vmem:[%s1] sm:$0xf]
      %vm82 = vcmask 31744
      %v84 = vsel %vm82, %v80, 0
      %v87 = vsel %vm47, %v81, 0
      %89 = vmatprep.subr.mxu0 0.0
      %90 = vmatpush1.msra.mxu0 0.0
      %91 = vmatprep.subr.mxu0 0.0
      %92 = vmatpush1.msra.mxu0 0.0
      %93 = vmatprep.subr.mxu0 0.0
      %94 = vmatpush1.msra.mxu0 0.0
      %95 = vmatprep.subr.mxu0 0.0
      %96 = vmatpush1.msra.mxu0 0.0
      %97 = vmatprep.subr.mxu0 0.0
      %98 = vmatpush1.msra.mxu0 0.0
      %99 = vmatprep.subr.mxu0 0.0
      %100 = vmatpush1.msra.mxu0 0.0
      %101 = vmatprep.subr.mxu0 0.0
      %102 = vmatpush1.msra.mxu0 0.0
      %103 = vmatprep.subr.mxu0 0.0
      %104 = vmatpush1.msra.mxu0 0.0
      %105 = vmatprep.subr.mxu0 0.0
      %106 = vmatpush1.msra.mxu0 0.0
      %107 = vmatprep.subr.mxu0 0.0
      %108 = vmatpush1.msra.mxu0 0.0
      %109 = vmatprep.subr.mxu0 0.0
      %110 = vmatpush1.msra.mxu0 0.0
      %111 = vmatprep.subr.mxu0 0.0
      %112 = vmatpush1.msra.mxu0 0.0
      %113 = vmatprep.subr.mxu0 0.0
      %114 = vmatpush1.msra.mxu0 0.0
      %115 = vmatprep.subr.mxu0 0.0
      %116 = vmatpush1.msra.mxu0 0.0
      %117 = vmatprep.subr.mxu0 0.0
      %118 = vmatpush1.msra.mxu0 0.0
      %119 = vmatprep.subr.mxu0 0.0
      %120 = vmatpush1.msra.mxu0 %v87
      %121 = vmatprep.subr.mxu0 0.0
      %122 = vmatpush2.msra.mxu0 0.0
      %123 = vmatprep.subr.mxu0 0.0
      %124 = vmatpush2.msra.mxu0 0.0
      %125 = vmatprep.subr.mxu0 0.0
      %126 = vmatpush2.msra.mxu0 0.0
      %127 = vmatprep.subr.mxu0 0.0
      %128 = vmatpush2.msra.mxu0 0.0
      %129 = vmatprep.subr.mxu0 0.0
      %130 = vmatpush2.msra.mxu0 0.0
      %131 = vmatprep.subr.mxu0 0.0
      %132 = vmatpush2.msra.mxu0 0.0
      %133 = vmatprep.subr.mxu0 0.0
      %134 = vmatpush2.msra.mxu0 0.0
      %135 = vmatprep.subr.mxu0 0.0
      %136 = vmatpush2.msra.mxu0 0.0
      %137 = vmatprep.subr.mxu0 0.0
      %138 = vmatpush2.msra.mxu0 0.0
      %139 = vmatprep.subr.mxu0 0.0
      %140 = vmatpush2.msra.mxu0 0.0
      %141 = vmatprep.subr.mxu0 0.0
      %142 = vmatpush2.msra.mxu0 0.0
      %143 = vmatprep.subr.mxu0 0.0
      %144 = vmatpush2.msra.mxu0 0.0
      %145 = vmatprep.subr.mxu0 0.0
      %146 = vmatpush2.msra.mxu0 0.0
      %147 = vmatprep.subr.mxu0 0.0
      %148 = vmatpush2.msra.mxu0 0.0
      %149 = vmatprep.subr.mxu0 0.0
      %150 = vmatpush2.msra.mxu0 0.0
      %151 = vmatprep.subr.mxu0 0.0
      %152 = vmatpush2.msra.mxu0 0.0
      %153 = vmatprep.mubr.f32.mxu0 0.0
      %154 = vmatmul.mubr.f32.gmra.mxu0 %v84
      %v155 = vpop.f32.mrf.mxu0
      %v156 = vadd.f32 0.0, %v155
      %v157 = vpop.f32.mrf.mxu0
      %158 = vdwg.mxu0
      %v159 = vmax.f32 %v156, 0.0
      %v160 = vld [vmem:[%s2] sm:$0x1f]
      %v161 = vld [vmem:[%s3] sm:$0x1]
      %v163 = vlaneseq
      %v164 = vshrl.u32 %v163, 7
      %v165 = vsub.s32 0, %v164
      %v166 = vrot.slane %v161, %v165
      %vm168 = vcmask 39936
      %v170 = vsel %vm168, %v159, 0
      %vm172 = vcmask 1044480
      %v174 = vsel %vm172, %v160, 0
      %176 = vmatprep.subr.mxu0 0.0
      %177 = vmatpush1.msra.mxu0 0.0
      %178 = vmatprep.subr.mxu0 0.0
      %179 = vmatpush1.msra.mxu0 0.0
      %180 = vmatprep.subr.mxu0 0.0
      %181 = vmatpush1.msra.mxu0 0.0
      %182 = vmatprep.subr.mxu0 0.0
      %183 = vmatpush1.msra.mxu0 0.0
      %184 = vmatprep.subr.mxu0 0.0
      %185 = vmatpush1.msra.mxu0 0.0
      %186 = vmatprep.subr.mxu0 0.0
      %187 = vmatpush1.msra.mxu0 0.0
      %188 = vmatprep.subr.mxu0 0.0
      %189 = vmatpush1.msra.mxu0 0.0
      %190 = vmatprep.subr.mxu0 0.0
      %191 = vmatpush1.msra.mxu0 0.0
      %192 = vmatprep.subr.mxu0 0.0
      %193 = vmatpush1.msra.mxu0 0.0
      %194 = vmatprep.subr.mxu0 0.0
      %195 = vmatpush1.msra.mxu0 0.0
      %196 = vmatprep.subr.mxu0 0.0
      %197 = vmatpush1.msra.mxu0 0.0
      %198 = vmatprep.subr.mxu0 0.0
      %199 = vmatpush1.msra.mxu0 0.0
      %200 = vmatprep.subr.mxu0 0.0
      %201 = vmatpush1.msra.mxu0 0.0
      %202 = vmatprep.subr.mxu0 0.0
      %203 = vmatpush1.msra.mxu0 0.0
      %204 = vmatprep.subr.mxu0 0.0
      %205 = vmatpush1.msra.mxu0 0.0
      %206 = vmatprep.subr.mxu0 0.0
      %207 = vmatpush1.msra.mxu0 %v174
      %208 = vmatprep.subr.mxu0 0.0
      %209 = vmatpush2.msra.mxu0 0.0
      %210 = vmatprep.subr.mxu0 0.0
      %211 = vmatpush2.msra.mxu0 0.0
      %212 = vmatprep.subr.mxu0 0.0
      %213 = vmatpush2.msra.mxu0 0.0
      %214 = vmatprep.subr.mxu0 0.0
      %215 = vmatpush2.msra.mxu0 0.0
      %216 = vmatprep.subr.mxu0 0.0
      %217 = vmatpush2.msra.mxu0 0.0
      %218 = vmatprep.subr.mxu0 0.0
      %219 = vmatpush2.msra.mxu0 0.0
      %220 = vmatprep.subr.mxu0 0.0
      %221 = vmatpush2.msra.mxu0 0.0
      %222 = vmatprep.subr.mxu0 0.0
      %223 = vmatpush2.msra.mxu0 0.0
      %224 = vmatprep.subr.mxu0 0.0
      %225 = vmatpush2.msra.mxu0 0.0
      %226 = vmatprep.subr.mxu0 0.0
      %227 = vmatpush2.msra.mxu0 0.0
      %228 = vmatprep.subr.mxu0 0.0
      %229 = vmatpush2.msra.mxu0 0.0
      %230 = vmatprep.subr.mxu0 0.0
      %231 = vmatpush2.msra.mxu0 0.0
      %232 = vmatprep.subr.mxu0 0.0
      %233 = vmatpush2.msra.mxu0 0.0
      %234 = vmatprep.subr.mxu0 0.0
      %235 = vmatpush2.msra.mxu0 0.0
      %236 = vmatprep.subr.mxu0 0.0
      %237 = vmatpush2.msra.mxu0 0.0
      %238 = vmatprep.subr.mxu0 0.0
      %239 = vmatpush2.msra.mxu0 0.0
      %240 = vmatprep.mubr.f32.mxu0 0.0
      %241 = vmatmul.mubr.f32.gmra.mxu0 %v170
      %v242 = vpop.f32.mrf.mxu0
      %v243 = vadd.f32 %v166, %v242
      %v244 = vpop.f32.mrf.mxu0
      %245 = vdwg.mxu0
      %v246 = vsel %vm74, %v243, -inf
      %247 = vmax.xlane.f32.xlu0 %v246
      %v248 = vpop.xlane.xlu0 %247
      %v249 = vsub.f32 %v243, %v248
      %v250 = vmul.f32 %v249, 1.442695
      %v251 = vpow.pop %v250
      %v252 = vsel %vm74, %v251, 0.0
      %253 = vadd.xlane.f32.xlu0 %v252
      %v254 = vpop.xlane.xlu0 %253
      %v255 = vrcp.pop %v254
      %v256 = vmul.f32 %v251, %v255
      %257 = vst.msk [vmem:[#allocation6] sm:$0x3] %vm74, %v256
    $region29: #{tpu_custom_call.1} parent=1 // pred_fallthru
      _
    // Predicated region
    $region30: #{tpu_custom_call.1} parent=1 // pred_check
      _
    $region31: #{tpu_custom_call.1} parent=1 // pred_check_branch
      %259 = sbr.rel (0) target = $region33
    $region32: #{tpu_custom_call.1} parent=1 // pred_region
      %s261 = ssub.s32 32, 32
      %262 = vsyncadd [#allocation5], %s261
      %s264 = sshll.u32 [#allocation6], 4
      %s265 = int_to_ptr.vmem [resolvable:$true] %s264
      %267 = dma.vmem_to_hbm [thread:$0]  %s265, 32, %s4, [#allocation5]
    $region33: #{tpu_custom_call.1} parent=1 // pred_fallthru
      _
    // Predicated region
    $region34: #{tpu_custom_call.1} parent=1 // pred_check
      _
    $region35: #{tpu_custom_call.1} parent=1 // pred_check_branch
      %269 = sbr.rel (0) target = $region37
    $region36: #{tpu_custom_call.1} parent=1 // pred_region
      %270 = dma.done [#allocation5], 32
    $region37: #{tpu_custom_call.1} parent=1 // pred_fallthru
      _
    %271 = vsyncpa [#allocation4], 1
    %272 = vsyncpa [#allocation5], 1

// kernel: tpu_custom_call.1
$region0: #{tpu_custom_call.1}
  #allocation0 [shape = 'u32[]', space=smem, size = 0x4, offset = 0x4, fixed_abs, tag = 'smem constant byte address 0x4 - core index']
  #allocation1 [shape = 'u32[144,128]{1,0:T(1,128)}', space=vmem, size = 0x12000, scoped, tag = 'internal scratch']
  #allocation2 [shape = 'f32[2,4]{1,0:T(2,128)}', space=vmem, size = 0x400, scoped, tag = 'scratch operand']
  %s0 = inlined_call_operand.hbm [shape: f32[2,4,256], index: 0, kind: input, shape index: {}]
  %s1 = inlined_call_operand.vmem [shape: f32[4,5], index: 1, kind: input, shape index: {}]
  %s2 = inlined_call_operand.vmem [shape: f32[5,4], index: 2, kind: input, shape index: {}]
  %s3 = inlined_call_operand.vmem [shape: f32[1,4], index: 3, kind: input, shape index: {}]
  %s4 = inlined_call_operand.hbm [shape: f32[1,2,4], index: 4, kind: output, shape index: {}]
  %s5 = sld [smem:[#allocation0]]
  $region38: #{tpu_custom_call.1} parent=0
    _
  %s7 = ssub.s32 1, %s5
  %s8 = scalar_select 0, %s7, %s5
  $region1: #{tpu_custom_call.1} parent=0
    #allocation3 [shape = 'u8[8192]{0}', space=vmem, size = 0x2000, scoped, tag = 'input window, operand 0, single buffered']
    #allocation4 [shape = 's32[1]{0}', space=sflag, size = 0x4, scoped, tag = 'scoped memory for tpu_custom_call.1']
    #allocation5 [shape = 's32[1]{0}', space=sflag, size = 0x4, scoped, tag = 'scoped memory for tpu_custom_call.1']
    #allocation6 [shape = 'u8[1024]{0}', space=vmem, size = 0x400, scoped, tag = 'output window, operand 0, single buffered']
    %9 = vsyncpa [#allocation4], 0
    %10 = vsyncpa [#allocation5], 0
    // Predicated region
    $region2: #{tpu_custom_call.1} parent=1 // pred_check
      _
    $region3: #{tpu_custom_call.1} parent=1 // pred_check_branch
      %12 = sbr.rel (0) target = $region5
    $region4: #{tpu_custom_call.1} parent=1 // pred_region
      %s14 = ssub.s32 256, 256
      %15 = vsyncadd [#allocation4], %s14
      %s16 = sshll.u32 [#allocation3], 4
      %s17 = int_to_ptr.vmem [resolvable:$true] %s16
      %22 = dma.hbm_to_vmem [thread:$0]  %s0, 256, %s17, [#allocation4], 128, 128, 8
    $region5: #{tpu_custom_call.1} parent=1 // pred_fallthru
      _
    // Predicated region
    $region6: #{tpu_custom_call.1} parent=1 // pred_check
      _
    $region7: #{tpu_custom_call.1} parent=1 // pred_check_branch
      %24 = sbr.rel (0) target = $region9
    $region8: #{tpu_custom_call.1} parent=1 // pred_region
      _
    $region9: #{tpu_custom_call.1} parent=1 // pred_fallthru
      _
    // Predicated region
    $region10: #{tpu_custom_call.1} parent=1 // pred_check
      _
    $region11: #{tpu_custom_call.1} parent=1 // pred_check_branch
      %26 = sbr.rel (0) target = $region13
    $region12: #{tpu_custom_call.1} parent=1 // pred_region
      _
    $region13: #{tpu_custom_call.1} parent=1 // pred_fallthru
      _
    // Predicated region
    $region14: #{tpu_custom_call.1} parent=1 // pred_check
      _
    $region15: #{tpu_custom_call.1} parent=1 // pred_check_branch
      %28 = sbr.rel (0) target = $region17
    $region16: #{tpu_custom_call.1} parent=1 // pred_region
      _
    $region17: #{tpu_custom_call.1} parent=1 // pred_fallthru
      _
    // Predicated region
    $region18: #{tpu_custom_call.1} parent=1 // pred_check
      _
    $region19: #{tpu_custom_call.1} parent=1 // pred_check_branch
      %30 = sbr.rel (0) target = $region21
    $region20: #{tpu_custom_call.1} parent=1 // pred_region
      %31 = dma.done [#allocation4], 256
    $region21: #{tpu_custom_call.1} parent=1 // pred_fallthru
      _
    %p32 = scmp.eq.s32.totalorder 0, 0
    // Predicated region
    $region22: #{tpu_custom_call.1} parent=1 // pred_check
      %p33 = pneg %p32
    $region23: #{tpu_custom_call.1} parent=1 // pred_check_branch
      %35 = sbr.rel (%p33) target = $region25
    $region24: #{tpu_custom_call.1} parent=1 // pred_region
      %vm36 = vcmask 25600
      %37 = vst.msk [vmem:[#allocation2] sm:$0x3] %vm36, 0.0
    $region25: #{tpu_custom_call.1} parent=1 // pred_fallthru
      _
    %v38 = vld [vmem:[#allocation3] sm:$0xff]
    %v39 = vld [vmem:[#allocation3 + $0x8] sm:$0xff]
    %v40 = vld [vmem:[#allocation2] sm:$0x3]
    %v43 = vcombine.high %v38, %v38
    %v44 = vcombine.high %v39, %v39
    %vm47 = vcmask 1043456
    %v48 = vsel %vm47, %v38, 0.0
    %v49 = vsel %vm47, %v43, 0.0
    %v50 = vadd.f32 %v48, %v49
    %51 = vadd.xlane.f32.xlu0 %v50
    %v52 = vpop.xlane.xlu0 %51
    %v53 = vsel %vm47, %v39, 0.0
    %v54 = vsel %vm47, %v44, 0.0
    %v55 = vadd.f32 %v53, %v54
    %56 = vadd.xlane.f32.xlu0 %v55
    %v57 = vpop.xlane.xlu0 %56
    %v60 = vlaneseq
    %v61 = vand.u32 %v60, 127
    %v62 = vlaneseq
    %v63 = vshrl.u32 %v62, 7
    %v64 = vsub.s32 %v61, %v63
    %v65 = vrot.slane %v52, %v64
    %v66 = vlaneseq
    %v67 = vshrl.u32 %v66, 7
    %v68 = vsub.s32 %v61, %v67
    %v69 = vrot.slane %v57, %v68
    %vm70 = vcmask 1041409
    %v71 = vsel %vm70, %v69, %v65
    %v73 = vadd.f32 %v40, %v71
    %vm74 = vcmask 25600
    %75 = vst.msk [vmem:[#allocation2] sm:$0x3] %vm74, %v73
    // Predicated region
    $region26: #{tpu_custom_call.1} parent=1 // pred_check
      %p76 = pneg %p32
    $region27: #{tpu_custom_call.1} parent=1 // pred_check_branch
      %78 = sbr.rel (%p76) target = $region29
    $region28: #{tpu_custom_call.1} parent=1 // pred_region
      %v79 = vld [vmem:[#allocation2] sm:$0x3]
      %v80 = vmul.f32 %v79, 0.00390625
      %v81 = vld [vmem:[%s1] sm:$0xf]
      %vm82 = vcmask 31744
      %v84 = vsel %vm82, %v80, 0
      %v87 = vsel %vm47, %v81, 0
      %89 = vmatprep.subr.mxu0 0.0
      %90 = vmatpush1.msra.mxu0 0.0
      %91 = vmatprep.subr.mxu0 0.0
      %92 = vmatpush1.msra.mxu0 0.0
      %93 = vmatprep.subr.mxu0 0.0
      %94 = vmatpush1.msra.mxu0 0.0
      %95 = vmatprep.subr.mxu0 0.0
      %96 = vmatpush1.msra.mxu0 0.0
      %97 = vmatprep.subr.mxu0 0.0
      %98 = vmatpush1.msra.mxu0 0.0
      %99 = vmatprep.subr.mxu0 0.0
      %100 = vmatpush1.msra.mxu0 0.0
      %101 = vmatprep.subr.mxu0 0.0
      %102 = vmatpush1.msra.mxu0 0.0
      %103 = vmatprep.subr.mxu0 0.0
      %104 = vmatpush1.msra.mxu0 0.0
      %105 = vmatprep.subr.mxu0 0.0
      %106 = vmatpush1.msra.mxu0 0.0
      %107 = vmatprep.subr.mxu0 0.0
      %108 = vmatpush1.msra.mxu0 0.0
      %109 = vmatprep.subr.mxu0 0.0
      %110 = vmatpush1.msra.mxu0 0.0
      %111 = vmatprep.subr.mxu0 0.0
      %112 = vmatpush1.msra.mxu0 0.0
      %113 = vmatprep.subr.mxu0 0.0
      %114 = vmatpush1.msra.mxu0 0.0
      %115 = vmatprep.subr.mxu0 0.0
      %116 = vmatpush1.msra.mxu0 0.0
      %117 = vmatprep.subr.mxu0 0.0
      %118 = vmatpush1.msra.mxu0 0.0
      %119 = vmatprep.subr.mxu0 0.0
      %120 = vmatpush1.msra.mxu0 %v87
      %121 = vmatprep.subr.mxu0 0.0
      %122 = vmatpush2.msra.mxu0 0.0
      %123 = vmatprep.subr.mxu0 0.0
      %124 = vmatpush2.msra.mxu0 0.0
      %125 = vmatprep.subr.mxu0 0.0
      %126 = vmatpush2.msra.mxu0 0.0
      %127 = vmatprep.subr.mxu0 0.0
      %128 = vmatpush2.msra.mxu0 0.0
      %129 = vmatprep.subr.mxu0 0.0
      %130 = vmatpush2.msra.mxu0 0.0
      %131 = vmatprep.subr.mxu0 0.0
      %132 = vmatpush2.msra.mxu0 0.0
      %133 = vmatprep.subr.mxu0 0.0
      %134 = vmatpush2.msra.mxu0 0.0
      %135 = vmatprep.subr.mxu0 0.0
      %136 = vmatpush2.msra.mxu0 0.0
      %137 = vmatprep.subr.mxu0 0.0
      %138 = vmatpush2.msra.mxu0 0.0
      %139 = vmatprep.subr.mxu0 0.0
      %140 = vmatpush2.msra.mxu0 0.0
      %141 = vmatprep.subr.mxu0 0.0
      %142 = vmatpush2.msra.mxu0 0.0
      %143 = vmatprep.subr.mxu0 0.0
      %144 = vmatpush2.msra.mxu0 0.0
      %145 = vmatprep.subr.mxu0 0.0
      %146 = vmatpush2.msra.mxu0 0.0
      %147 = vmatprep.subr.mxu0 0.0
      %148 = vmatpush2.msra.mxu0 0.0
      %149 = vmatprep.subr.mxu0 0.0
      %150 = vmatpush2.msra.mxu0 0.0
      %151 = vmatprep.subr.mxu0 0.0
      %152 = vmatpush2.msra.mxu0 0.0
      %153 = vmatprep.mubr.f32.mxu0 0.0
      %154 = vmatmul.mubr.f32.gmra.mxu0 %v84
      %v155 = vpop.f32.mrf.mxu0
      %v156 = vadd.f32 0.0, %v155
      %v157 = vpop.f32.mrf.mxu0
      %158 = vdwg.mxu0
      %v159 = vmax.f32 %v156, 0.0
      %v160 = vld [vmem:[%s2] sm:$0x1f]
      %v161 = vld [vmem:[%s3] sm:$0x1]
      %v163 = vlaneseq
      %v164 = vshrl.u32 %v163, 7
      %v165 = vsub.s32 0, %v164
      %v166 = vrot.slane %v161, %v165
      %vm168 = vcmask 39936
      %v170 = vsel %vm168, %v159, 0
      %vm172 = vcmask 1044480
      %v174 = vsel %vm172, %v160, 0
      %176 = vmatprep.subr.mxu0 0.0
      %177 = vmatpush1.msra.mxu0 0.0
      %178 = vmatprep.subr.mxu0 0.0
      %179 = vmatpush1.msra.mxu0 0.0
      %180 = vmatprep.subr.mxu0 0.0
      %181 = vmatpush1.msra.mxu0 0.0
      %182 = vmatprep.subr.mxu0 0.0
      %183 = vmatpush1.msra.mxu0 0.0
      %184 = vmatprep.subr.mxu0 0.0
      %185 = vmatpush1.msra.mxu0 0.0
      %186 = vmatprep.subr.mxu0 0.0
      %187 = vmatpush1.msra.mxu0 0.0
      %188 = vmatprep.subr.mxu0 0.0
      %189 = vmatpush1.msra.mxu0 0.0
      %190 = vmatprep.subr.mxu0 0.0
      %191 = vmatpush1.msra.mxu0 0.0
      %192 = vmatprep.subr.mxu0 0.0
      %193 = vmatpush1.msra.mxu0 0.0
      %194 = vmatprep.subr.mxu0 0.0
      %195 = vmatpush1.msra.mxu0 0.0
      %196 = vmatprep.subr.mxu0 0.0
      %197 = vmatpush1.msra.mxu0 0.0
      %198 = vmatprep.subr.mxu0 0.0
      %199 = vmatpush1.msra.mxu0 0.0
      %200 = vmatprep.subr.mxu0 0.0
      %201 = vmatpush1.msra.mxu0 0.0
      %202 = vmatprep.subr.mxu0 0.0
      %203 = vmatpush1.msra.mxu0 0.0
      %204 = vmatprep.subr.mxu0 0.0
      %205 = vmatpush1.msra.mxu0 0.0
      %206 = vmatprep.subr.mxu0 0.0
      %207 = vmatpush1.msra.mxu0 %v174
      %208 = vmatprep.subr.mxu0 0.0
      %209 = vmatpush2.msra.mxu0 0.0
      %210 = vmatprep.subr.mxu0 0.0
      %211 = vmatpush2.msra.mxu0 0.0
      %212 = vmatprep.subr.mxu0 0.0
      %213 = vmatpush2.msra.mxu0 0.0
      %214 = vmatprep.subr.mxu0 0.0
      %215 = vmatpush2.msra.mxu0 0.0
      %216 = vmatprep.subr.mxu0 0.0
      %217 = vmatpush2.msra.mxu0 0.0
      %218 = vmatprep.subr.mxu0 0.0
      %219 = vmatpush2.msra.mxu0 0.0
      %220 = vmatprep.subr.mxu0 0.0
      %221 = vmatpush2.msra.mxu0 0.0
      %222 = vmatprep.subr.mxu0 0.0
      %223 = vmatpush2.msra.mxu0 0.0
      %224 = vmatprep.subr.mxu0 0.0
      %225 = vmatpush2.msra.mxu0 0.0
      %226 = vmatprep.subr.mxu0 0.0
      %227 = vmatpush2.msra.mxu0 0.0
      %228 = vmatprep.subr.mxu0 0.0
      %229 = vmatpush2.msra.mxu0 0.0
      %230 = vmatprep.subr.mxu0 0.0
      %231 = vmatpush2.msra.mxu0 0.0
      %232 = vmatprep.subr.mxu0 0.0
      %233 = vmatpush2.msra.mxu0 0.0
      %234 = vmatprep.subr.mxu0 0.0
      %235 = vmatpush2.msra.mxu0 0.0
      %236 = vmatprep.subr.mxu0 0.0
      %237 = vmatpush2.msra.mxu0 0.0
      %238 = vmatprep.subr.mxu0 0.0
      %239 = vmatpush2.msra.mxu0 0.0
      %240 = vmatprep.mubr.f32.mxu0 0.0
      %241 = vmatmul.mubr.f32.gmra.mxu0 %v170
      %v242 = vpop.f32.mrf.mxu0
      %v243 = vadd.f32 %v166, %v242
      %v244 = vpop.f32.mrf.mxu0
      %245 = vdwg.mxu0
      %v246 = vsel %vm74, %v243, -inf
      %247 = vmax.xlane.f32.xlu0 %v246
      %v248 = vpop.xlane.xlu0 %247
      %v249 = vsub.f32 %v243, %v248
      %v250 = vmul.f32 %v249, 1.442695
      %v251 = vpow.pop %v250
      %v252 = vsel %vm74, %v251, 0.0
      %253 = vadd.xlane.f32.xlu0 %v252
      %v254 = vpop.xlane.xlu0 %253
      %v255 = vrcp.pop %v254
      %v256 = vmul.f32 %v251, %v255
      %257 = vst.msk [vmem:[#allocation6] sm:$0x3] %vm74, %v256
    $region29: #{tpu_custom_call.1} parent=1 // pred_fallthru
      _
    // Predicated region
    $region30: #{tpu_custom_call.1} parent=1 // pred_check
      _
    $region31: #{tpu_custom_call.1} parent=1 // pred_check_branch
      %259 = sbr.rel (0) target = $region33
    $region32: #{tpu_custom_call.1} parent=1 // pred_region
      %s261 = ssub.s32 32, 32
      %262 = vsyncadd [#allocation5], %s261
      %s264 = sshll.u32 [#allocation6], 4
      %s265 = int_to_ptr.vmem [resolvable:$true] %s264
      %267 = dma.vmem_to_hbm [thread:$0]  %s265, 32, %s4, [#allocation5]
    $region33: #{tpu_custom_call.1} parent=1 // pred_fallthru
      _
    // Predicated region
    $region34: #{tpu_custom_call.1} parent=1 // pred_check
      _
    $region35: #{tpu_custom_call.1} parent=1 // pred_check_branch
      %269 = sbr.rel (0) target = $region37
    $region36: #{tpu_custom_call.1} parent=1 // pred_region
      %270 = dma.done [#allocation5], 32
    $region37: #{tpu_custom_call.1} parent=1 // pred_fallthru
      _
    %271 = vsyncpa [#allocation4], 1
    %272 = vsyncpa [#allocation5], 1

</llo_original>
